<compile_context>
chip_gen: v7x
topology: tpu7x:2x2x1
jax: 0.10.0
libtpu: 0.0.40
codegen_flags: <defaults>
</compile_context>

<pallas_src>
import functools

import jax
import jax.numpy as jnp
from jax import lax
from jax.experimental import pallas as pl
from jax.experimental.pallas import tpu as pltpu

LANE = 128


def _hash32(x):
    """lowbias32-style integer hash (int32, wrapping arithmetic, VPU/scalar only)."""
    x = x ^ lax.shift_right_logical(x, 16)
    x = x * jnp.int32(0x045D9F3B)
    x = x ^ lax.shift_right_logical(x, 16)
    x = x * jnp.int32(0x045D9F3B)
    x = x ^ lax.shift_right_logical(x, 16)
    return x


def _ste_kernel(seed_ref, key_ref, diff_ref, out_ref):
    """Lane-dense Bernoulli(sigmoid(diff)) sampling, one f32 output slab.

    seed_ref : SMEM (1,)      int32  pre-hashed RNG seed (scalar prefetch)
    key_ref  : VMEM (B, 128)  int32  2*undirected_key + valid_flag per edge
    diff_ref : VMEM (B, 128)  f32    logit1 - logit0 of the canonical copy
    out_ref  : VMEM (B, 128)  f32    s * valid   (s in {0,1})
    """
    seed_h = seed_ref[0]                              # already hashed in wrapper
    key = key_ref[...]                                # (B, 128) int32

    # Counter-based uniform in (0, 1): both directions of an undirected edge
    # share the same key -> same sample (mirrors the scatter of half_inputs
    # to both edge ids in the PyTorch code).  24 random bits.
    bits = _hash32(key ^ seed_h)
    u = (lax.shift_right_logical(bits, 8).astype(jnp.float32) + 0.5) * (1.0 / (1 << 24))

    # Exact single-exp Bernoulli test:  u < sigmoid(diff)  <=>  u + u*exp(-diff) < 1.
    pred = u + u * jnp.exp(-diff_ref[...]) < 1.0

    # LSB of key = "this directed edge gets a sample" (non-self-loop with an
    # existing canonical copy).  Padding rows have key == 0 -> masked out.
    validf = jnp.bitwise_and(key, jnp.int32(1)).astype(jnp.float32)

    out_ref[...] = jnp.where(pred, validf, 0.0)       # == s * valid


@functools.partial(
    jax.jit, static_argnames=("num_nodes", "seed", "block_rows", "core_parallel")
)
def straight_through_estimator(
    x, src, dst, *, num_nodes, seed=1234, block_rows=4096, core_parallel=False
):
    """Forward pass of StraightThroughEstimator.

    x         : (E, 2) float32 logits per directed edge
    src, dst  : (E,)   int32   directed edge list (undirected graph stored both ways)
    num_nodes : static Python int (so the whole wrapper jits with no host sync)
    core_parallel : set True on v7x (2 TCs/chip) to shard edge tiles across cores.
    """
    E = x.shape[0]
    assert x.shape == (E, 2)
    assert E > 0, "empty edge list is not supported"
    # int32 key scheme: 2 * (min*n + max) + valid must stay below 2^31.
    assert 2 * num_nodes * num_nodes < 2 ** 31, (
        "num_nodes too large for the int32 edge-key scheme; use 64-bit keys"
    )
    src = src.astype(jnp.int32)
    dst = dst.astype(jnp.int32)
    n = jnp.int32(num_nodes)

    # ---- canonical-edge pairing, O(E log E) (sort + searchsorted) ----
    # NOTE: assumes a simple graph (no duplicate directed edges).
    dkey = src * n + dst                             # directed-edge key
    rkey = dst * n + src                             # key of the reversed edge
    order = jnp.argsort(dkey)
    sorted_keys = dkey[order]
    pos = jnp.clip(jnp.searchsorted(sorted_keys, rkey), 0, E - 1)
    partner = order[pos].astype(jnp.int32)           # index of the reversed edge
    found = sorted_keys[pos] == rkey                 # does the reversed edge exist?

    edge_ids = jnp.arange(E, dtype=jnp.int32)
    canon_id = jnp.where(src < dst, edge_ids, partner)     # canonical (src<dst) copy

    # Single logit-diff per edge (halves the f32 input traffic + 1-D gather).
    xf = x.astype(jnp.float32)
    diff_all = xf[:, 1] - xf[:, 0]                          # (E,)
    diff = jnp.take(diff_all, canon_id)                     # (E,) canonical diff

    # A directed edge gets a sample iff it is not a self-loop and (if it is the
    # reverse copy) its canonical copy exists — exactly the rows the PyTorch
    # scatter writes.
    valid = (src != dst) & ((src < dst) | found)

    # Single int32 per edge: undirected key in the high bits, validity in the LSB.
    ukey = jnp.minimum(src, dst) * n + jnp.maximum(src, dst)
    key = ukey * jnp.int32(2) + valid.astype(jnp.int32)

    # ---- lane-dense padded layout: 1-D per-edge vectors -> (rows_pad, 128) ----
    rows = max(1, (E + LANE - 1) // LANE)
    br = min(block_rows, ((rows + 7) // 8) * 8)      # tile rows: multiple of 8
    num_blocks = (rows + br - 1) // br
    rows_pad = num_blocks * br
    E_pad = rows_pad * LANE
    pad = E_pad - E

    key2d = jnp.pad(key, (0, pad)).reshape(rows_pad, LANE)   # pad key=0 -> invalid
    diff2d = jnp.pad(diff, (0, pad)).reshape(rows_pad, LANE)
    seed_arr = _hash32(jnp.array([seed], dtype=jnp.int32))   # hash seed once, host side

    tile_spec = pl.BlockSpec((br, LANE), lambda i, seed_ref: (i, 0))

    edge_axis_sem = pltpu.CORE_PARALLEL if core_parallel else "parallel"

    s_slab = pl.pallas_call(
        _ste_kernel,
        out_shape=jax.ShapeDtypeStruct((rows_pad, LANE), jnp.float32),
        grid_spec=pltpu.PrefetchScalarGridSpec(
            num_scalar_prefetch=1,                   # seed lands in SMEM
            grid=(num_blocks,),
            in_specs=[tile_spec, tile_spec],
            out_specs=tile_spec,
        ),
        compiler_params=pltpu.CompilerParams(
            dimension_semantics=(edge_axis_sem,),
        ),
    )(seed_arr, key2d, diff2d)

    # Reconstruct the (E, 2) one-hot layout: out0 = valid - s, out1 = s.
    s_flat = s_slab.reshape(E_pad)[:E]
    validf = valid.astype(jnp.float32)
    out = jnp.stack([validf - s_flat, s_flat], axis=-1)
    return out


if __name__ == "__main__":
    key = jax.random.PRNGKey(0)

    # Small undirected graph on 6 nodes: 7 undirected edges stored in both
    # directions + 2 self-loops -> 16 directed edges.
    und = [(0, 1), (1, 2), (2, 3), (3, 4), (4, 5), (5, 0), (0, 3)]
    src_list = [a for a, b in und] + [b for a, b in und] + [2, 4]
    dst_list = [b for a, b in und] + [a for a, b in und] + [2, 4]
    src = jnp.array(src_list, dtype=jnp.int32)
    dst = jnp.array(dst_list, dtype=jnp.int32)
    E = src.shape[0]
    num_nodes = int(max(src_list + dst_list)) + 1    # host-side static int, no sync

    x = jax.random.normal(key, (E, 2), dtype=jnp.float32)

    out = straight_through_estimator(x, src, dst, num_nodes=num_nodes, seed=1234)
    out = jax.block_until_ready(out)

    # --- sanity checks on STE semantics ---
    n_und = len(und)
    fwd = out[:n_und]                 # edges (a, b) with a < b
    rev = out[n_und:2 * n_und]        # their reverses (b, a)
    loops = out[2 * n_und:]           # self-loops
    assert out.shape == (E, 2)
    assert bool(jnp.all(jnp.abs(fwd - rev) < 1e-6)), "edge/reverse rows differ"
    assert bool(jnp.all(jnp.abs(fwd.sum(-1) - 1.0) < 1e-6)), "rows not one-hot"
    assert bool(jnp.all((fwd == 0.0) | (fwd == 1.0))), "values not in {0,1}"
    assert bool(jnp.all(loops == 0.0)), "self-loop rows must stay zero"

    print("KERNEL_OK")
</pallas_src>

<mosaic_0001>
module attributes {stable_mosaic.version = 11 : i64} {
  func.func @_ste_kernel(%arg0: i32, %arg1: memref<1xi32, #tpu.memory_space<smem>>, %arg2: memref<8x128xi32, #tpu.memory_space<vmem>>, %arg3: memref<8x128xf32, #tpu.memory_space<vmem>>, %arg4: memref<8x128xf32, #tpu.memory_space<vmem>>) attributes {dimension_semantics = [#tpu.dimension_semantics<parallel>], iteration_bounds = array<i64: 1>, scalar_prefetch = 1 : i64, scratch_operands = 0 : i64, tpu.core_type = #tpu.core_type<tc>, window_params = [{transform_indices = @transform_0, window_bounds = array<i64: 8, 128>}, {transform_indices = @transform_1, window_bounds = array<i64: 8, 128>}, {transform_indices = @transform_2, window_bounds = array<i64: 8, 128>}]} {
    %c0 = arith.constant 0 : index
    %0 = memref.load %arg1[%c0] : memref<1xi32, #tpu.memory_space<smem>>
    %c0_0 = arith.constant 0 : index
    %c0_1 = arith.constant 0 : index
    %1 = vector.load %arg2[%c0_0, %c0_1] : memref<8x128xi32, #tpu.memory_space<vmem>>, vector<8x128xi32>
    %2 = vector.broadcast %0 : i32 to vector<8x128xi32>
    %3 = arith.xori %1, %2 : vector<8x128xi32>
    %c16_i32 = arith.constant 16 : i32
    %4 = vector.broadcast %c16_i32 : i32 to vector<8x128xi32>
    %5 = arith.shrui %3, %4 : vector<8x128xi32>
    %6 = arith.xori %3, %5 : vector<8x128xi32>
    %c73244475_i32 = arith.constant 73244475 : i32
    %7 = vector.broadcast %c73244475_i32 : i32 to vector<8x128xi32>
    %8 = arith.muli %6, %7 : vector<8x128xi32>
    %c16_i32_2 = arith.constant 16 : i32
    %9 = vector.broadcast %c16_i32_2 : i32 to vector<8x128xi32>
    %10 = arith.shrui %8, %9 : vector<8x128xi32>
    %11 = arith.xori %8, %10 : vector<8x128xi32>
    %c73244475_i32_3 = arith.constant 73244475 : i32
    %12 = vector.broadcast %c73244475_i32_3 : i32 to vector<8x128xi32>
    %13 = arith.muli %11, %12 : vector<8x128xi32>
    %c16_i32_4 = arith.constant 16 : i32
    %14 = vector.broadcast %c16_i32_4 : i32 to vector<8x128xi32>
    %15 = arith.shrui %13, %14 : vector<8x128xi32>
    %16 = arith.xori %13, %15 : vector<8x128xi32>
    %c8_i32 = arith.constant 8 : i32
    %17 = vector.broadcast %c8_i32 : i32 to vector<8x128xi32>
    %18 = arith.shrui %16, %17 : vector<8x128xi32>
    %19 = arith.sitofp %18 : vector<8x128xi32> to vector<8x128xf32>
    %cst = arith.constant 5.000000e-01 : f32
    %20 = vector.broadcast %cst : f32 to vector<8x128xf32>
    %21 = arith.addf %19, %20 : vector<8x128xf32>
    %cst_5 = arith.constant 5.96046448E-8 : f32
    %22 = vector.broadcast %cst_5 : f32 to vector<8x128xf32>
    %23 = arith.mulf %21, %22 : vector<8x128xf32>
    %c0_6 = arith.constant 0 : index
    %c0_7 = arith.constant 0 : index
    %24 = vector.load %arg3[%c0_6, %c0_7] : memref<8x128xf32, #tpu.memory_space<vmem>>, vector<8x128xf32>
    %cst_8 = arith.constant 0.000000e+00 : f32
    %25 = vector.broadcast %cst_8 : f32 to vector<8x128xf32>
    %26 = arith.subf %25, %24 : vector<8x128xf32>
    %27 = math.exp %26 : vector<8x128xf32>
    %28 = arith.mulf %23, %27 : vector<8x128xf32>
    %29 = arith.addf %23, %28 : vector<8x128xf32>
    %cst_9 = arith.constant 1.000000e+00 : f32
    %30 = vector.broadcast %cst_9 : f32 to vector<8x128xf32>
    %31 = arith.cmpf olt, %29, %30 : vector<8x128xf32>
    %c1_i32 = arith.constant 1 : i32
    %32 = vector.broadcast %c1_i32 : i32 to vector<8x128xi32>
    %33 = arith.andi %1, %32 : vector<8x128xi32>
    %34 = arith.sitofp %33 : vector<8x128xi32> to vector<8x128xf32>
    %cst_10 = arith.constant 0.000000e+00 : f32
    %35 = vector.broadcast %cst_10 : f32 to vector<8x128xf32>
    %36 = arith.select %31, %34, %35 : vector<8x128xi1>, vector<8x128xf32>
    %c0_11 = arith.constant 0 : index
    %c0_12 = arith.constant 0 : index
    %37 = vector.load %arg4[%c0_11, %c0_12] : memref<8x128xf32, #tpu.memory_space<vmem>>, vector<8x128xf32>
    tpu.vector_store %arg4[%c0_11, %c0_12], %36 {strides = array<i32>} : memref<8x128xf32, #tpu.memory_space<vmem>>, vector<8x128xf32>,
    return
  }
  func.func @transform_0(%arg0: i32, %arg1: memref<1xi32, #tpu.memory_space<smem>>) -> (i32, i32) {
    %c0_i32 = arith.constant 0 : i32
    %c0_i32_0 = arith.constant 0 : i32
    return %arg0, %c0_i32 : i32, i32
  }
  func.func @transform_1(%arg0: i32, %arg1: memref<1xi32, #tpu.memory_space<smem>>) -> (i32, i32) {
    %c0_i32 = arith.constant 0 : i32
    %c0_i32_0 = arith.constant 0 : i32
    return %arg0, %c0_i32 : i32, i32
  }
  func.func @transform_2(%arg0: i32, %arg1: memref<1xi32, #tpu.memory_space<smem>>) -> (i32, i32) {
    %c0_i32 = arith.constant 0 : i32
    %c0_i32_0 = arith.constant 0 : i32
    return %arg0, %c0_i32 : i32, i32
  }
}

</mosaic_0001>

<llo_original>
// kernel: custom-call.1
$region0: #{custom-call.1}
  %s0 = inlined_call_operand.vmem [shape: u32[16], index: 0, kind: output, shape index: {}]

// kernel: straight_through_estimator.1
$region0: #{straight_through_estimator.1}
  #allocation0 [shape = 'u32[]', space=smem, size = 0x4, offset = 0x4, fixed_abs, tag = 'smem constant byte address 0x4 - core index']
  #allocation1 [shape = 'u32[144,128]{1,0:T(1,128)}', space=vmem, size = 0x12000, scoped, tag = 'internal scratch']
  #allocation2 [shape = 's32[1]{0}', space=sflag, size = 0x4, scoped, tag = 'scoped memory for straight_through_estimator.1']
  #allocation3 [shape = 's32[1]{0:T(128)S(6)}', space=smem, size = 0x200, scoped, tag = 'prefetched SMEM operand 0']
  %s0 = inlined_call_operand.<no memory space> [shape: s32[1], index: 0, kind: input, shape index: {}]
  %s1 = inlined_call_operand.vmem [shape: s32[8,128], index: 1, kind: input, shape index: {}]
  %s2 = inlined_call_operand.vmem [shape: f32[8,128], index: 2, kind: input, shape index: {}]
  %s3 = inlined_call_operand.vmem [shape: f32[8,128], index: 3, kind: output, shape index: {}]
  %s4 = sld [smem:[#allocation0]]
  $region18: #{straight_through_estimator.1} parent=0
    _
  %s6 = ssub.s32 1, %s4
  %s7 = scalar_select 0, %s6, %s4
  %8 = sst [smem:[#allocation3]] %s0
  // Predicated region
  $region2: #{straight_through_estimator.1} parent=0 // pred_check
    _
  $region3: #{straight_through_estimator.1} parent=0 // pred_check_branch
    %10 = sbr.rel (0) target = $region5
  $region4: #{straight_through_estimator.1} parent=0 // pred_region
    _
  $region5: #{straight_through_estimator.1} parent=0 // pred_fallthru
    _
  // Predicated region
  $region6: #{straight_through_estimator.1} parent=0 // pred_check
    _
  $region7: #{straight_through_estimator.1} parent=0 // pred_check_branch
    %12 = sbr.rel (0) target = $region9
  $region8: #{straight_through_estimator.1} parent=0 // pred_region
    _
  $region9: #{straight_through_estimator.1} parent=0 // pred_fallthru
    _
  %s13 = sld [smem:[#allocation3]]
  %v14 = vld [vmem:[%s1] sm:$0xff]
  %v15 = vstv %s13
  %v16 = vxor.u32 %v14, %v15
  %v17 = vshrl.u32 %v16, 16
  %v18 = vxor.u32 %v16, %v17
  %v19 = vmul.u32 %v18, 73244475
  %v20 = vshrl.u32 %v19, 16
  %v21 = vxor.u32 %v19, %v20
  %v22 = vmul.u32 %v21, 73244475
  %v23 = vshrl.u32 %v22, 16
  %v24 = vxor.u32 %v22, %v23
  %v25 = vshrl.u32 %v24, 8
  %v26 = vcvt.s32.f32 %v25
  %v27 = vadd.f32 %v26, 0.5
  %v28 = vmul.f32 %v27, 5.9604645e-08
  %v29 = vld [vmem:[%s2] sm:$0xff]
  %v30 = vsub.f32 0.0, %v29
  %v31 = vmul.f32 %v30, 1.442695
  %v32 = vpow.pop %v31
  %v33 = vmul.f32 %v28, %v32
  %v34 = vadd.f32 %v28, %v33
  %vm35 = vcmp.lt.f32.partialorder %v34, 1.0
  %v36 = vand.u32 %v14, 1
  %v37 = vcvt.s32.f32 %v36
  %v38 = vsel %vm35, %v37, 0.0
  %39 = vst [vmem:[%s3] sm:$0xff] %v38
  // Predicated region
  $region10: #{straight_through_estimator.1} parent=0 // pred_check
    _
  $region11: #{straight_through_estimator.1} parent=0 // pred_check_branch
    %41 = sbr.rel (0) target = $region13
  $region12: #{straight_through_estimator.1} parent=0 // pred_region
    _
  $region13: #{straight_through_estimator.1} parent=0 // pred_fallthru
    _
  // Predicated region
  $region14: #{straight_through_estimator.1} parent=0 // pred_check
    _
  $region15: #{straight_through_estimator.1} parent=0 // pred_check_branch
    %43 = sbr.rel (0) target = $region17
  $region16: #{straight_through_estimator.1} parent=0 // pred_region
    _
  $region17: #{straight_through_estimator.1} parent=0 // pred_fallthru
    _

</llo_original>
